<compile_context>
chip_gen: v7x
topology: tpu7x:2x2x1
jax: 0.10.0
libtpu: 0.0.40
codegen_flags: <defaults>
</compile_context>

<pallas_src>
import functools

import jax
import jax.numpy as jnp
from jax import lax
from jax.experimental import pallas as pl
from jax.experimental.pallas import tpu as pltpu

_NEG_BIG = -1e30   # sentinel excluded from the row-wise max (python literal)
_POS_BIG = 1e30    # sentinel excluded from the row-wise min
_EPS = 1e-12       # clamp before sqrt (matches torch .clamp(min=1e-12))


def _round_up(a: int, b: int) -> int:
    return ((a + b - 1) // b) * b


# --------------------------------------------------------------------------
# Path 1: whole X resident in VMEM, 1-D grid over row tiles, fori_loop over
# column tiles.
# --------------------------------------------------------------------------
def _triplet_resident_kernel(margin, n_col_tiles,        # python float / int
                             x_ref,                      # (Ct, tile, d) matmul dtype (resident)
                             sqc_ref, tc_ref, vc_ref,    # (Ct, 1, tile) f32 / i32 / i32 (resident)
                             sqr_ref, tr_ref,            # (tile, 1) f32 / i32 (tiled by row)
                             loss_ref, corr_ref):        # (tile, 1) f32 / i32 outputs
    i = pl.program_id(0)
    xr = x_ref[i]                                        # (tile, d) row tile
    sqr = sqr_ref[...]                                   # (tile, 1)
    tr = tr_ref[...]                                     # (tile, 1)
    tile = sqr.shape[0]

    def body(j, carry):
        ap, an = carry
        xc = x_ref[j]                                    # (tile, d) col tile
        gram = lax.dot_general(                          # MXU, f32 accumulation
            xr, xc, dimension_numbers=(((1,), (1,)), ((), ())),
            preferred_element_type=jnp.float32)
        dist2 = sqr + sqc_ref[j] - 2.0 * gram            # (tile, tile) f32
        tc = tc_ref[j]                                   # (1, tile)
        vc = vc_ref[j] != 0                              # (1, tile) valid cols
        same = jnp.logical_and(tr == tc, vc)             # positives (diag incl.)
        diff = jnp.logical_and(tr != tc, vc)             # negatives
        ap = jnp.maximum(
            ap, jnp.max(jnp.where(same, dist2, _NEG_BIG), axis=1, keepdims=True))
        an = jnp.minimum(
            an, jnp.min(jnp.where(diff, dist2, _POS_BIG), axis=1, keepdims=True))
        return ap, an

    init = (jnp.full((tile, 1), _NEG_BIG, jnp.float32),
            jnp.full((tile, 1), _POS_BIG, jnp.float32))
    ap, an = lax.fori_loop(0, n_col_tiles, body, init,
                           unroll=(n_col_tiles <= 8))

    # sqrt only the two mined vectors; clamp/sqrt are monotone so this matches
    # the reference's mining on clamped sqrt distances.
    d_ap = jnp.sqrt(jnp.maximum(ap, _EPS))
    d_an = jnp.sqrt(jnp.maximum(an, _EPS))
    loss_ref[...] = jnp.maximum(d_ap - d_an + margin, 0.0)
    corr_ref[...] = (d_an >= d_ap).astype(jnp.int32)


# --------------------------------------------------------------------------
# Path 2 (fallback for very large n*d): 2-D (row-tile, col-tile) grid with
# running max/min accumulators in VMEM scratch.
# --------------------------------------------------------------------------
def _triplet_tile_kernel(margin,                         # python float
                         xr_ref, xc_ref,                 # (tm,d) / (tn,d)
                         sqr_ref, sqc_ref,               # (tm,1) / (1,tn) f32
                         tr_ref, tc_ref,                 # (tm,1) / (1,tn) i32
                         vc_ref,                         # (1,tn) i32 validity
                         loss_ref, corr_ref,             # (tm,1) f32 / i32
                         ap_acc, an_acc):                # (tm,1) f32 scratch
    j = pl.program_id(1)

    @pl.when(j == 0)
    def _init():
        ap_acc[...] = jnp.full_like(ap_acc, _NEG_BIG)
        an_acc[...] = jnp.full_like(an_acc, _POS_BIG)

    gram = lax.dot_general(
        xr_ref[...], xc_ref[...],
        dimension_numbers=(((1,), (1,)), ((), ())),
        preferred_element_type=jnp.float32)
    dist2 = sqr_ref[...] + sqc_ref[...] - 2.0 * gram

    tr = tr_ref[...]
    tc = tc_ref[...]
    vc = vc_ref[...] != 0
    same = jnp.logical_and(tr == tc, vc)
    diff = jnp.logical_and(tr != tc, vc)

    ap_acc[...] = jnp.maximum(
        ap_acc[...],
        jnp.max(jnp.where(same, dist2, _NEG_BIG), axis=1, keepdims=True))
    an_acc[...] = jnp.minimum(
        an_acc[...],
        jnp.min(jnp.where(diff, dist2, _POS_BIG), axis=1, keepdims=True))

    @pl.when(j == pl.num_programs(1) - 1)
    def _finalize():
        d_ap = jnp.sqrt(jnp.maximum(ap_acc[...], _EPS))
        d_an = jnp.sqrt(jnp.maximum(an_acc[...], _EPS))
        loss_ref[...] = jnp.maximum(d_ap - d_an + margin, 0.0)
        corr_ref[...] = (d_an >= d_ap).astype(jnp.int32)


# --------------------------------------------------------------------------
# Wrapper
# --------------------------------------------------------------------------
def ori_triplet_loss(inputs: jax.Array,
                     targets: jax.Array,
                     margin: float = 0.3,
                     matmul_dtype=jnp.bfloat16,
                     max_resident_bytes: int = 8 * 1024 * 1024):
    """Pallas TPU implementation of OriTripletLoss.forward.

    Args:
      inputs:  (n, feat_dim) float feature matrix.
      targets: (n,) integer labels.
      margin:  triplet margin.
      matmul_dtype: dtype fed to the MXU for the gram matrix (bf16 default;
        pass jnp.float32 for exact f32 reference numerics).
      max_resident_bytes: if the (padded) feature matrix in matmul_dtype is at
        most this size, keep it resident in VMEM (path 1); otherwise use the
        2-D tiled fallback (path 2).

    Returns:
      (loss, correct): scalar f32 loss, scalar int32 count of dist_an >= dist_ap.
    """
    n, d = inputs.shape
    margin = float(margin)

    # Tile size: one full tile for small batches, 128-row tiles otherwise.
    if n <= 128:
        tile = _round_up(max(n, 8), 16)
    else:
        tile = 128
    n_pad = _round_up(n, tile)
    pad = n_pad - n

    x = inputs.astype(jnp.float32)
    t = targets.astype(jnp.int32)
    if pad:
        x = jnp.pad(x, ((0, pad), (0, 0)))
        t = jnp.pad(t, ((0, pad),), constant_values=-1)

    xb = x.astype(matmul_dtype)                 # MXU operand
    sq = jnp.sum(x * x, axis=1)                 # f32 squared row norms (n_pad,)
    sq_row = sq[:, None]                        # (n_pad, 1)
    t_row = t[:, None]                          # (n_pad, 1)
    valid = (jnp.arange(n_pad, dtype=jnp.int32) < n).astype(jnp.int32)

    grid_r = n_pad // tile
    grid_c = n_pad // tile
    itemsize = jnp.dtype(matmul_dtype).itemsize
    x_bytes = n_pad * d * itemsize
    use_resident = x_bytes <= max_resident_bytes

    if use_resident:
        # ---- path 1: X resident in VMEM, 1-D row grid, fori_loop over cols ----
        x3 = xb.reshape(grid_c, tile, d)
        sq3 = sq.reshape(grid_c, 1, tile)
        t3 = t.reshape(grid_c, 1, tile)
        v3 = valid.reshape(grid_c, 1, tile)

        kernel = functools.partial(_triplet_resident_kernel, margin, grid_c)
        cost = pl.CostEstimate(
            flops=2 * n_pad * n_pad * d,
            transcendentals=2 * n_pad,
            bytes_accessed=int(x_bytes + 32 * n_pad))

        loss_rows, corr_rows = pl.pallas_call(
            kernel,
            out_shape=(
                jax.ShapeDtypeStruct((n_pad, 1), jnp.float32),
                jax.ShapeDtypeStruct((n_pad, 1), jnp.int32),
            ),
            grid_spec=pltpu.PrefetchScalarGridSpec(
                num_scalar_prefetch=0,
                grid=(grid_r,),
                in_specs=[
                    pl.BlockSpec((grid_c, tile, d), lambda i: (0, 0, 0)),  # X (resident)
                    pl.BlockSpec((grid_c, 1, tile), lambda i: (0, 0, 0)),  # sq cols
                    pl.BlockSpec((grid_c, 1, tile), lambda i: (0, 0, 0)),  # label cols
                    pl.BlockSpec((grid_c, 1, tile), lambda i: (0, 0, 0)),  # validity
                    pl.BlockSpec((tile, 1), lambda i: (i, 0)),             # sq rows
                    pl.BlockSpec((tile, 1), lambda i: (i, 0)),             # label rows
                ],
                out_specs=(
                    pl.BlockSpec((tile, 1), lambda i: (i, 0)),
                    pl.BlockSpec((tile, 1), lambda i: (i, 0)),
                ),
            ),
            compiler_params=pltpu.CompilerParams(
                dimension_semantics=("parallel",),
                vmem_limit_bytes=32 * 1024 * 1024,
            ),
            cost_estimate=cost,
        )(x3, sq3, t3, v3, sq_row, t_row)
    else:
        # ---- path 2: 2-D tiled fallback (huge n*d) ----
        sq_col = sq[None, :]
        t_col = t[None, :]
        v_col = valid[None, :]

        kernel = functools.partial(_triplet_tile_kernel, margin)
        x_tile_bytes = tile * d * itemsize
        cost = pl.CostEstimate(
            flops=2 * n_pad * n_pad * d,
            transcendentals=2 * n_pad,
            bytes_accessed=int(x_tile_bytes * grid_r * (1 + grid_c) + 24 * n_pad))

        loss_rows, corr_rows = pl.pallas_call(
            kernel,
            out_shape=(
                jax.ShapeDtypeStruct((n_pad, 1), jnp.float32),
                jax.ShapeDtypeStruct((n_pad, 1), jnp.int32),
            ),
            grid_spec=pltpu.PrefetchScalarGridSpec(
                num_scalar_prefetch=0,
                grid=(grid_r, grid_c),
                in_specs=[
                    pl.BlockSpec((tile, d), lambda i, j: (i, 0)),   # X row tile
                    pl.BlockSpec((tile, d), lambda i, j: (j, 0)),   # X col tile
                    pl.BlockSpec((tile, 1), lambda i, j: (i, 0)),   # sq row
                    pl.BlockSpec((1, tile), lambda i, j: (0, j)),   # sq col
                    pl.BlockSpec((tile, 1), lambda i, j: (i, 0)),   # labels row
                    pl.BlockSpec((1, tile), lambda i, j: (0, j)),   # labels col
                    pl.BlockSpec((1, tile), lambda i, j: (0, j)),   # validity
                ],
                out_specs=(
                    pl.BlockSpec((tile, 1), lambda i, j: (i, 0)),
                    pl.BlockSpec((tile, 1), lambda i, j: (i, 0)),
                ),
                scratch_shapes=[
                    pltpu.VMEM((tile, 1), jnp.float32),   # running max dist^2
                    pltpu.VMEM((tile, 1), jnp.float32),   # running min dist^2
                ],
            ),
            compiler_params=pltpu.CompilerParams(
                dimension_semantics=("parallel", "arbitrary"),
                vmem_limit_bytes=64 * 1024 * 1024,
            ),
            cost_estimate=cost,
        )(xb, xb, sq_row, sq_col, t_row, t_col, v_col)

    # Tiny O(n) final reduction as plain-JAX glue; padded rows are sliced away.
    loss = jnp.sum(loss_rows[:n, 0]) / n
    correct = jnp.sum(corr_rows[:n, 0])
    return loss, correct


# --------------------------------------------------------------------------
# Self-test
# --------------------------------------------------------------------------
if __name__ == "__main__":
    key = jax.random.PRNGKey(0)
    k1, k2 = jax.random.split(key)

    def reference(inputs, targets, margin=0.3, matmul_dtype=jnp.bfloat16):
        # Pure-JAX mirror of the kernel math (same bf16 gram / f32 norms), an
        # exact rewrite of the PyTorch forward (monotone clamp+sqrt).
        x = inputs.astype(jnp.float32)
        xb = x.astype(matmul_dtype)
        gram = lax.dot_general(xb, xb, (((1,), (1,)), ((), ())),
                               preferred_element_type=jnp.float32)
        sq = jnp.sum(x * x, axis=1, keepdims=True)
        dist2 = sq + sq.T - 2.0 * gram
        mask = targets[:, None] == targets[None, :]
        ap2 = jnp.max(jnp.where(mask, dist2, -1e30), axis=1)
        an2 = jnp.min(jnp.where(mask, 1e30, dist2), axis=1)
        d_ap = jnp.sqrt(jnp.maximum(ap2, 1e-12))
        d_an = jnp.sqrt(jnp.maximum(an2, 1e-12))
        loss = jnp.mean(jnp.maximum(d_ap - d_an + margin, 0.0))
        correct = jnp.sum((d_an >= d_ap).astype(jnp.int32))
        return loss, correct

    # --- small demo consistent with the module: batch=8 (4 ids x 2), dim=32 ---
    n, d = 8, 32
    inputs = jax.random.normal(k1, (n, d), dtype=jnp.float32)
    targets = jnp.array([0, 0, 1, 1, 2, 2, 3, 3], dtype=jnp.int32)

    loss, correct = ori_triplet_loss(inputs, targets, margin=0.3)
    loss = jax.block_until_ready(loss)
    correct = jax.block_until_ready(correct)
    ref_loss, ref_correct = reference(inputs, targets, margin=0.3)
    assert jnp.allclose(loss, ref_loss, rtol=1e-4, atol=1e-4), (loss, ref_loss)
    assert int(correct) == int(ref_correct), (correct, ref_correct)

    # --- resident path, multiple row tiles + padding: n=200, d=64 ---
    n2, d2 = 200, 64
    inputs2 = jax.random.normal(k2, (n2, d2), dtype=jnp.float32)
    targets2 = jnp.repeat(jnp.arange(50, dtype=jnp.int32), 4)

    loss2, correct2 = ori_triplet_loss(inputs2, targets2, margin=0.3)
    loss2 = jax.block_until_ready(loss2)
    correct2 = jax.block_until_ready(correct2)
    ref_loss2, ref_correct2 = reference(inputs2, targets2, margin=0.3)
    assert jnp.allclose(loss2, ref_loss2, rtol=1e-4, atol=1e-4), (loss2, ref_loss2)
    assert int(correct2) == int(ref_correct2), (correct2, ref_correct2)

    # --- force the 2-D tiled fallback path on the same data ---
    loss3, correct3 = ori_triplet_loss(inputs2, targets2, margin=0.3,
                                       max_resident_bytes=0)
    loss3 = jax.block_until_ready(loss3)
    correct3 = jax.block_until_ready(correct3)
    assert jnp.allclose(loss3, ref_loss2, rtol=1e-4, atol=1e-4), (loss3, ref_loss2)
    assert int(correct3) == int(ref_correct2), (correct3, ref_correct2)

    print("KERNEL_OK")
</pallas_src>

<mosaic_0001>
module attributes {stable_mosaic.version = 11 : i64} {
  func.func @_triplet_resident_kernel(%arg0: i32, %arg1: memref<1x16x32xbf16, #tpu.memory_space<vmem>>, %arg2: memref<1x1x16xf32, #tpu.memory_space<vmem>>, %arg3: memref<1x1x16xi32, #tpu.memory_space<vmem>>, %arg4: memref<1x1x16xi32, #tpu.memory_space<vmem>>, %arg5: memref<16x1xf32, #tpu.memory_space<vmem>>, %arg6: memref<16x1xi32, #tpu.memory_space<vmem>>, %arg7: memref<16x1xf32, #tpu.memory_space<vmem>>, %arg8: memref<16x1xi32, #tpu.memory_space<vmem>>) attributes {dimension_semantics = [#tpu.dimension_semantics<parallel>], iteration_bounds = array<i64: 1>, scalar_prefetch = 0 : i64, scratch_operands = 0 : i64, tpu.core_type = #tpu.core_type<tc>, window_params = [{pipeline_mode = #tpu.pipeline_mode<synchronous>, transform_indices = @transform_0, window_bounds = array<i64: 1, 16, 32>}, {pipeline_mode = #tpu.pipeline_mode<synchronous>, transform_indices = @transform_1, window_bounds = array<i64: 1, 1, 16>}, {pipeline_mode = #tpu.pipeline_mode<synchronous>, transform_indices = @transform_2, window_bounds = array<i64: 1, 1, 16>}, {pipeline_mode = #tpu.pipeline_mode<synchronous>, transform_indices = @transform_3, window_bounds = array<i64: 1, 1, 16>}, {transform_indices = @transform_4, window_bounds = array<i64: 16, 1>}, {transform_indices = @transform_5, window_bounds = array<i64: 16, 1>}, {transform_indices = @transform_6, window_bounds = array<i64: 16, 1>}, {transform_indices = @transform_7, window_bounds = array<i64: 16, 1>}]} {
    %0 = arith.index_cast %arg0 : i32 to index
    %c0 = arith.constant 0 : index
    %c0_0 = arith.constant 0 : index
    %1 = vector.load %arg1[%0, %c0, %c0_0] : memref<1x16x32xbf16, #tpu.memory_space<vmem>>, vector<1x16x32xbf16>
    %2 = vector.shape_cast %1 : vector<1x16x32xbf16> to vector<16x32xbf16>
    %c0_1 = arith.constant 0 : index
    %c0_2 = arith.constant 0 : index
    %3 = vector.load %arg5[%c0_1, %c0_2] : memref<16x1xf32, #tpu.memory_space<vmem>>, vector<16x1xf32>
    %c0_3 = arith.constant 0 : index
    %c0_4 = arith.constant 0 : index
    %4 = vector.load %arg6[%c0_3, %c0_4] : memref<16x1xi32, #tpu.memory_space<vmem>>, vector<16x1xi32>
    %cst = arith.constant -1.000000e+30 : f32
    %5 = vector.broadcast %cst : f32 to vector<16x1xf32>
    %cst_5 = arith.constant 1.000000e+30 : f32
    %6 = vector.broadcast %cst_5 : f32 to vector<16x1xf32>
    %c0_i32 = arith.constant 0 : i32
    %7 = arith.index_cast %c0_i32 : i32 to index
    %c0_6 = arith.constant 0 : index
    %c0_7 = arith.constant 0 : index
    %8 = vector.load %arg1[%7, %c0_6, %c0_7] : memref<1x16x32xbf16, #tpu.memory_space<vmem>>, vector<1x16x32xbf16>
    %9 = vector.shape_cast %8 : vector<1x16x32xbf16> to vector<16x32xbf16>
    %cst_8 = arith.constant dense<0.000000e+00> : vector<16x16xf32>
    %10 = tpu.matmul %2, %9, %cst_8 {dimension_numbers = #tpu.dot_dimension_numbers<[1], [1], [0], [0], [0, 0, 1, 0], [], []>} : vector<16x32xbf16>, vector<16x32xbf16>, vector<16x16xf32> -> vector<16x16xf32>
    %11 = arith.index_cast %c0_i32 : i32 to index
    %c0_9 = arith.constant 0 : index
    %c0_10 = arith.constant 0 : index
    %12 = vector.load %arg2[%11, %c0_9, %c0_10] : memref<1x1x16xf32, #tpu.memory_space<vmem>>, vector<1x1x16xf32>
    %13 = vector.shape_cast %12 : vector<1x1x16xf32> to vector<1x16xf32>
    %14 = vector.broadcast %3 : vector<16x1xf32> to vector<16x16xf32>
    %15 = vector.broadcast %13 : vector<1x16xf32> to vector<16x16xf32>
    %16 = arith.addf %14, %15 : vector<16x16xf32>
    %cst_11 = arith.constant 2.000000e+00 : f32
    %17 = vector.broadcast %cst_11 : f32 to vector<16x16xf32>
    %18 = arith.mulf %17, %10 : vector<16x16xf32>
    %19 = arith.subf %16, %18 : vector<16x16xf32>
    %20 = arith.index_cast %c0_i32 : i32 to index
    %c0_12 = arith.constant 0 : index
    %c0_13 = arith.constant 0 : index
    %21 = vector.load %arg3[%20, %c0_12, %c0_13] : memref<1x1x16xi32, #tpu.memory_space<vmem>>, vector<1x1x16xi32>
    %22 = vector.shape_cast %21 : vector<1x1x16xi32> to vector<1x16xi32>
    %23 = arith.index_cast %c0_i32 : i32 to index
    %c0_14 = arith.constant 0 : index
    %c0_15 = arith.constant 0 : index
    %24 = vector.load %arg4[%23, %c0_14, %c0_15] : memref<1x1x16xi32, #tpu.memory_space<vmem>>, vector<1x1x16xi32>
    %25 = vector.shape_cast %24 : vector<1x1x16xi32> to vector<1x16xi32>
    %c0_i32_16 = arith.constant 0 : i32
    %26 = vector.broadcast %c0_i32_16 : i32 to vector<1x16xi32>
    %27 = arith.cmpi ne, %25, %26 : vector<1x16xi32>
    %28 = vector.broadcast %4 : vector<16x1xi32> to vector<16x16xi32>
    %29 = vector.broadcast %22 : vector<1x16xi32> to vector<16x16xi32>
    %30 = arith.cmpi eq, %28, %29 : vector<16x16xi32>
    %31 = vector.broadcast %27 : vector<1x16xi1> to vector<16x16xi1>
    %32 = arith.andi %30, %31 : vector<16x16xi1>
    %33 = vector.broadcast %4 : vector<16x1xi32> to vector<16x16xi32>
    %34 = vector.broadcast %22 : vector<1x16xi32> to vector<16x16xi32>
    %35 = arith.cmpi ne, %33, %34 : vector<16x16xi32>
    %36 = vector.broadcast %27 : vector<1x16xi1> to vector<16x16xi1>
    %37 = arith.andi %35, %36 : vector<16x16xi1>
    %cst_17 = arith.constant -1.000000e+30 : f32
    %38 = vector.broadcast %cst_17 : f32 to vector<16x16xf32>
    %39 = arith.select %32, %19, %38 : vector<16x16xi1>, vector<16x16xf32>
    %cst_18 = arith.constant dense<0xFF800000> : vector<16xf32>
    %40 = vector.multi_reduction <maximumf>, %39, %cst_18 [1] : vector<16x16xf32> to vector<16xf32>
    %41 = vector.shape_cast %40 : vector<16xf32> to vector<16x1xf32>
    %42 = arith.maximumf %5, %41 : vector<16x1xf32>
    %cst_19 = arith.constant 1.000000e+30 : f32
    %43 = vector.broadcast %cst_19 : f32 to vector<16x16xf32>
    %44 = arith.select %37, %19, %43 : vector<16x16xi1>, vector<16x16xf32>
    %cst_20 = arith.constant dense<0x7F800000> : vector<16xf32>
    %45 = vector.multi_reduction <minimumf>, %44, %cst_20 [1] : vector<16x16xf32> to vector<16xf32>
    %46 = vector.shape_cast %45 : vector<16xf32> to vector<16x1xf32>
    %47 = arith.minimumf %6, %46 : vector<16x1xf32>
    %c1_i32 = arith.constant 1 : i32
    %cst_21 = arith.constant 9.99999996E-13 : f32
    %48 = vector.broadcast %cst_21 : f32 to vector<16x1xf32>
    %49 = arith.maximumf %42, %48 : vector<16x1xf32>
    %50 = math.sqrt %49 : vector<16x1xf32>
    %cst_22 = arith.constant 9.99999996E-13 : f32
    %51 = vector.broadcast %cst_22 : f32 to vector<16x1xf32>
    %52 = arith.maximumf %47, %51 : vector<16x1xf32>
    %53 = math.sqrt %52 : vector<16x1xf32>
    %54 = arith.subf %50, %53 : vector<16x1xf32>
    %cst_23 = arith.constant 3.000000e-01 : f32
    %55 = vector.broadcast %cst_23 : f32 to vector<16x1xf32>
    %56 = arith.addf %54, %55 : vector<16x1xf32>
    %cst_24 = arith.constant 0.000000e+00 : f32
    %57 = vector.broadcast %cst_24 : f32 to vector<16x1xf32>
    %58 = arith.maximumf %56, %57 : vector<16x1xf32>
    %c0_25 = arith.constant 0 : index
    %c0_26 = arith.constant 0 : index
    %59 = vector.load %arg7[%c0_25, %c0_26] : memref<16x1xf32, #tpu.memory_space<vmem>>, vector<16x1xf32>
    tpu.vector_store %arg7[%c0_25, %c0_26], %58 {strides = array<i32>} : memref<16x1xf32, #tpu.memory_space<vmem>>, vector<16x1xf32>,
    %60 = arith.cmpf oge, %53, %50 : vector<16x1xf32>
    %61 = arith.extui %60 : vector<16x1xi1> to vector<16x1xi32>
    %c0_27 = arith.constant 0 : index
    %c0_28 = arith.constant 0 : index
    %62 = vector.load %arg8[%c0_27, %c0_28] : memref<16x1xi32, #tpu.memory_space<vmem>>, vector<16x1xi32>
    tpu.vector_store %arg8[%c0_27, %c0_28], %61 {strides = array<i32>} : memref<16x1xi32, #tpu.memory_space<vmem>>, vector<16x1xi32>,
    return
  }
  func.func @transform_0(%arg0: i32) -> (i32, i32, i32) {
    %c0_i32 = arith.constant 0 : i32
    %c0_i32_0 = arith.constant 0 : i32
    %c0_i32_1 = arith.constant 0 : i32
    %c0_i32_2 = arith.constant 0 : i32
    return %c0_i32, %c0_i32_0, %c0_i32_1 : i32, i32, i32
  }
  func.func @transform_1(%arg0: i32) -> (i32, i32, i32) {
    %c0_i32 = arith.constant 0 : i32
    %c0_i32_0 = arith.constant 0 : i32
    %c0_i32_1 = arith.constant 0 : i32
    %c0_i32_2 = arith.constant 0 : i32
    return %c0_i32, %c0_i32_0, %c0_i32_1 : i32, i32, i32
  }
  func.func @transform_2(%arg0: i32) -> (i32, i32, i32) {
    %c0_i32 = arith.constant 0 : i32
    %c0_i32_0 = arith.constant 0 : i32
    %c0_i32_1 = arith.constant 0 : i32
    %c0_i32_2 = arith.constant 0 : i32
    return %c0_i32, %c0_i32_0, %c0_i32_1 : i32, i32, i32
  }
  func.func @transform_3(%arg0: i32) -> (i32, i32, i32) {
    %c0_i32 = arith.constant 0 : i32
    %c0_i32_0 = arith.constant 0 : i32
    %c0_i32_1 = arith.constant 0 : i32
    %c0_i32_2 = arith.constant 0 : i32
    return %c0_i32, %c0_i32_0, %c0_i32_1 : i32, i32, i32
  }
  func.func @transform_4(%arg0: i32) -> (i32, i32) {
    %c0_i32 = arith.constant 0 : i32
    %c0_i32_0 = arith.constant 0 : i32
    return %arg0, %c0_i32 : i32, i32
  }
  func.func @transform_5(%arg0: i32) -> (i32, i32) {
    %c0_i32 = arith.constant 0 : i32
    %c0_i32_0 = arith.constant 0 : i32
    return %arg0, %c0_i32 : i32, i32
  }
  func.func @transform_6(%arg0: i32) -> (i32, i32) {
    %c0_i32 = arith.constant 0 : i32
    %c0_i32_0 = arith.constant 0 : i32
    return %arg0, %c0_i32 : i32, i32
  }
  func.func @transform_7(%arg0: i32) -> (i32, i32) {
    %c0_i32 = arith.constant 0 : i32
    %c0_i32_0 = arith.constant 0 : i32
    return %arg0, %c0_i32 : i32, i32
  }
}

</mosaic_0001>

<llo_original>
// kernel: tpu_custom_call.1
$region0: #{tpu_custom_call.1}
  #allocation0 [shape = 'u32[]', space=smem, size = 0x4, offset = 0x4, fixed_abs, tag = 'smem constant byte address 0x4 - core index']
  #allocation1 [shape = 'u32[144,128]{1,0:T(1,128)}', space=vmem, size = 0x12000, scoped, tag = 'internal scratch']
  %s0 = inlined_call_operand.vmem [shape: bf16[1,16,32], index: 0, kind: input, shape index: {}]
  %s1 = inlined_call_operand.vmem [shape: f32[1,1,16], index: 1, kind: input, shape index: {}]
  %s2 = inlined_call_operand.vmem [shape: s32[1,1,16], index: 2, kind: input, shape index: {}]
  %s3 = inlined_call_operand.vmem [shape: s32[1,1,16], index: 3, kind: input, shape index: {}]
  %s4 = inlined_call_operand.vmem [shape: f32[16,1], index: 4, kind: input, shape index: {}]
  %s5 = inlined_call_operand.vmem [shape: s32[16,1], index: 5, kind: input, shape index: {}]
  %s6 = inlined_call_operand.vmem [shape: f32[16,1], index: 6, kind: output, shape index: {0}]
  %s7 = inlined_call_operand.vmem [shape: s32[16,1], index: 7, kind: output, shape index: {1}]
  %8 = xla_tuple %s6, %s7
  %s9 = sld [smem:[#allocation0]]
  $region42: #{tpu_custom_call.1} parent=0
    _
  %s11 = ssub.s32 1, %s9
  %s12 = scalar_select 0, %s11, %s9
  // Predicated region
  $region2: #{tpu_custom_call.1} parent=0 // pred_check
    _
  $region3: #{tpu_custom_call.1} parent=0 // pred_check_branch
    %14 = sbr.rel (0) target = $region5
  $region4: #{tpu_custom_call.1} parent=0 // pred_region
    _
  $region5: #{tpu_custom_call.1} parent=0 // pred_fallthru
    _
  // Predicated region
  $region6: #{tpu_custom_call.1} parent=0 // pred_check
    _
  $region7: #{tpu_custom_call.1} parent=0 // pred_check_branch
    %16 = sbr.rel (0) target = $region9
  $region8: #{tpu_custom_call.1} parent=0 // pred_region
    _
  $region9: #{tpu_custom_call.1} parent=0 // pred_fallthru
    _
  // Predicated region
  $region10: #{tpu_custom_call.1} parent=0 // pred_check
    _
  $region11: #{tpu_custom_call.1} parent=0 // pred_check_branch
    %18 = sbr.rel (0) target = $region13
  $region12: #{tpu_custom_call.1} parent=0 // pred_region
    _
  $region13: #{tpu_custom_call.1} parent=0 // pred_fallthru
    _
  // Predicated region
  $region14: #{tpu_custom_call.1} parent=0 // pred_check
    _
  $region15: #{tpu_custom_call.1} parent=0 // pred_check_branch
    %20 = sbr.rel (0) target = $region17
  $region16: #{tpu_custom_call.1} parent=0 // pred_region
    _
  $region17: #{tpu_custom_call.1} parent=0 // pred_fallthru
    _
  // Predicated region
  $region18: #{tpu_custom_call.1} parent=0 // pred_check
    _
  $region19: #{tpu_custom_call.1} parent=0 // pred_check_branch
    %22 = sbr.rel (0) target = $region21
  $region20: #{tpu_custom_call.1} parent=0 // pred_region
    _
  $region21: #{tpu_custom_call.1} parent=0 // pred_fallthru
    _
  // Predicated region
  $region22: #{tpu_custom_call.1} parent=0 // pred_check
    _
  $region23: #{tpu_custom_call.1} parent=0 // pred_check_branch
    %24 = sbr.rel (0) target = $region25
  $region24: #{tpu_custom_call.1} parent=0 // pred_region
    _
  $region25: #{tpu_custom_call.1} parent=0 // pred_fallthru
    _
  %s26 = smul.u32 0, 2
  %s27 = smul.addr %s26, 4
  %s28 = scalar_lea.vmem %s0, %s27
  %v29 = vld [vmem:[%s28] sm:$0xf]
  %v30 = vld [vmem:[%s28 + $0x4] sm:$0xf]
  %v31 = vld [vmem:[%s4] sm:$0xff]
  %v32 = vld [vmem:[%s4 + $0x8] sm:$0xff]
  %v33 = vld [vmem:[%s5] sm:$0xff]
  %v34 = vld [vmem:[%s5 + $0x8] sm:$0xff]
  %v35 = vld [vmem:[%s0] sm:$0xf]
  %v36 = vld [vmem:[%s0 + $0x4] sm:$0xf]
  %v39 = vunpack.c.l.b16 %v29
  %v40 = vunpack.c.l.b16 %v30
  %v41 = vpack.c.b16 %v40, %v39
  %v44 = vunpack.c.l.b16 %v35
  %v45 = vunpack.c.l.b16 %v36
  %v46 = vpack.c.b16 %v45, %v44
  %vm47 = vcmask 261120
  %v49 = vsel %vm47, %v41, 0
  %v52 = vsel %vm47, %v46, 0
  %54 = vmatprep.subr.bf16.mxu0 0
  %55 = vmatpush1.bf16.xpose.msra.mxu0 %v52
  %56 = vmatprep.subr.bf16.mxu0 0
  %57 = vmatpush1.bf16.xpose.msra.mxu0 0
  %58 = vmatprep.subr.bf16.mxu0 0
  %59 = vmatpush1.bf16.xpose.msra.mxu0 0
  %60 = vmatprep.subr.bf16.mxu0 0
  %61 = vmatpush1.bf16.xpose.msra.mxu0 0
  %62 = vmatprep.subr.bf16.mxu0 0
  %63 = vmatpush1.bf16.xpose.msra.mxu0 0
  %64 = vmatprep.subr.bf16.mxu0 0
  %65 = vmatpush1.bf16.xpose.msra.mxu0 0
  %66 = vmatprep.subr.bf16.mxu0 0
  %67 = vmatpush1.bf16.xpose.msra.mxu0 0
  %68 = vmatprep.subr.bf16.mxu0 0
  %69 = vmatpush1.bf16.xpose.msra.mxu0 0
  %70 = vmatprep.subr.bf16.mxu0 0
  %71 = vmatpush1.bf16.xpose.msra.mxu0 0
  %72 = vmatprep.subr.bf16.mxu0 0
  %73 = vmatpush1.bf16.xpose.msra.mxu0 0
  %74 = vmatprep.subr.bf16.mxu0 0
  %75 = vmatpush1.bf16.xpose.msra.mxu0 0
  %76 = vmatprep.subr.bf16.mxu0 0
  %77 = vmatpush1.bf16.xpose.msra.mxu0 0
  %78 = vmatprep.subr.bf16.mxu0 0
  %79 = vmatpush1.bf16.xpose.msra.mxu0 0
  %80 = vmatprep.subr.bf16.mxu0 0
  %81 = vmatpush1.bf16.xpose.msra.mxu0 0
  %82 = vmatprep.subr.bf16.mxu0 0
  %83 = vmatpush1.bf16.xpose.msra.mxu0 0
  %84 = vmatprep.subr.bf16.mxu0 0
  %85 = vmatpush1.bf16.xpose.msra.mxu0 0
  %86 = vmatprep.mubr.bf16.mxu0 0
  %87 = vmatmul.mubr.bf16.gmra.mrb[0].mxu0 %v49
  %v88 = vpop.f32.mrb[0].mxu0
  %v89 = vadd.f32 0.0, %v88
  %v90 = vpop.f32.mrb[0].mxu0
  %v91 = vpop.f32.mrb[0].mxu0
  %v92 = vadd.f32 0.0, %v91
  %v93 = vpop.f32.mrb[0].mxu0
  %94 = vdwg.mxu0
  %v95 = vld [vmem:[%s1] sm:$0x1]
  %97 = vset.pattern.permute.xlu0 0
  %98 = vperm.xlu0 %97, %v31
  %v99 = vpop.permute.xlu0 %98
  %102 = vset.pattern.permute.xlu0 0
  %103 = vperm.xlu0 %102, %v32
  %v104 = vpop.permute.xlu0 %103
  %v107 = vlaneseq
  %v108 = vshrl.u32 %v107, 7
  %v109 = vsub.s32 0, %v108
  %v110 = vrot.slane %v95, %v109
  %v112 = vadd.f32 %v99, %v110
  %v113 = vadd.f32 %v104, %v110
  %v114 = vmul.f32 %v89, 2.0
  %v115 = vmul.f32 %v92, 2.0
  %v116 = vsub.f32 %v112, %v114
  %v117 = vsub.f32 %v113, %v115
  %v118 = vld [vmem:[%s2] sm:$0x1]
  %v119 = vld [vmem:[%s3] sm:$0x1]
  %vm120 = vcmp.ne.s32.totalorder %v119, 0
  %121 = vset.pattern.permute.xlu0 0
  %122 = vperm.xlu0 %121, %v33
  %v123 = vpop.permute.xlu0 %122
  %124 = vset.pattern.permute.xlu0 0
  %125 = vperm.xlu0 %124, %v34
  %v126 = vpop.permute.xlu0 %125
  %v127 = vlaneseq
  %v128 = vshrl.u32 %v127, 7
  %v129 = vsub.s32 0, %v128
  %v130 = vrot.slane %v118, %v129
  %vm131 = vcmp.eq.s32.totalorder %v123, %v130
  %vm132 = vcmp.eq.s32.totalorder %v126, %v130
  %v133 = vsel %vm120, 1, 0
  %v134 = vlaneseq
  %v135 = vshrl.u32 %v134, 7
  %v136 = vsub.s32 0, %v135
  %v137 = vrot.slane %v133, %v136
  %vm138 = vcmp.eq.s32.totalorder %v137, 1
  %vm139 = vmand %vm131, %vm138
  %vm140 = vmand %vm132, %vm138
  %vm141 = vcmp.ne.s32.totalorder %v123, %v130
  %vm142 = vcmp.ne.s32.totalorder %v126, %v130
  %vm143 = vmand %vm141, %vm138
  %vm144 = vmand %vm142, %vm138
  %v145 = vsel %vm139, %v116, -1e+30
  %v146 = vsel %vm140, %v117, -1e+30
  %vm147 = vcmask 130048
  %v148 = vsel %vm147, %v145, -inf
  %149 = vmax.xlane.f32.xlu0 %v148
  %v150 = vpop.xlane.xlu0 %149
  %v151 = vsel %vm147, %v146, -inf
  %152 = vmax.xlane.f32.xlu0 %v151
  %v153 = vpop.xlane.xlu0 %152
  %v154 = vmax.f32 %v150, -1e+30
  %v155 = vmax.f32 %v153, -1e+30
  %v156 = vsel %vm143, %v116, 1e+30
  %v157 = vsel %vm144, %v117, 1e+30
  %v158 = vsel %vm147, %v156, inf
  %159 = vmin.xlane.f32.xlu0 %v158
  %v160 = vpop.xlane.xlu0 %159
  %v161 = vsel %vm147, %v157, inf
  %162 = vmin.xlane.f32.xlu0 %v161
  %v163 = vpop.xlane.xlu0 %162
  %v164 = vmin.f32 %v160, 1e+30
  %v165 = vmin.f32 %v163, 1e+30
  %v166 = vmax.f32 %v154, 1e-12
  %v167 = vmax.f32 %v155, 1e-12
  %v168 = vrsqrt.pop %v166
  %v169 = vmul.f32 %v166, %v168
  %vm170 = vcmp.eq.f32.partialorder %v166, inf
  %v171 = vsel %vm170, %v166, %v169
  %vm172 = vcmp.eq.f32.partialorder %v166, 0.0
  %v173 = vand.u32 %v166, 2147483648
  %v174 = vsel %vm172, %v173, %v171
  %v175 = vrsqrt.pop %v167
  %v176 = vmul.f32 %v167, %v175
  %vm177 = vcmp.eq.f32.partialorder %v167, inf
  %v178 = vsel %vm177, %v167, %v176
  %vm179 = vcmp.eq.f32.partialorder %v167, 0.0
  %v180 = vand.u32 %v167, 2147483648
  %v181 = vsel %vm179, %v180, %v178
  %v182 = vmax.f32 %v164, 1e-12
  %v183 = vmax.f32 %v165, 1e-12
  %v184 = vrsqrt.pop %v182
  %v185 = vmul.f32 %v182, %v184
  %vm186 = vcmp.eq.f32.partialorder %v182, inf
  %v187 = vsel %vm186, %v182, %v185
  %vm188 = vcmp.eq.f32.partialorder %v182, 0.0
  %v189 = vand.u32 %v182, 2147483648
  %v190 = vsel %vm188, %v189, %v187
  %v191 = vrsqrt.pop %v183
  %v192 = vmul.f32 %v183, %v191
  %vm193 = vcmp.eq.f32.partialorder %v183, inf
  %v194 = vsel %vm193, %v183, %v192
  %vm195 = vcmp.eq.f32.partialorder %v183, 0.0
  %v196 = vand.u32 %v183, 2147483648
  %v197 = vsel %vm195, %v196, %v194
  %v198 = vsub.f32 %v174, %v190
  %v199 = vsub.f32 %v181, %v197
  %v200 = vadd.f32 %v198, 0.3
  %v201 = vadd.f32 %v199, 0.3
  %v202 = vmax.f32 %v200, 0.0
  %v203 = vmax.f32 %v201, 0.0
  %vm204 = vcmask 7168
  %205 = vst.msk [vmem:[%s6] sm:$0xff] %vm204, %v202
  %206 = vst.msk [vmem:[%s6 + $0x8] sm:$0xff] %vm204, %v203
  %vm207 = vcmp.ge.f32.partialorder %v190, %v174
  %vm208 = vcmp.ge.f32.partialorder %v197, %v181
  %v209 = vsel %vm207, 1, 0
  %v210 = vsel %vm208, 1, 0
  %211 = vst.msk [vmem:[%s7] sm:$0xff] %vm204, %v209
  %212 = vst.msk [vmem:[%s7 + $0x8] sm:$0xff] %vm204, %v210
  // Predicated region
  $region26: #{tpu_custom_call.1} parent=0 // pred_check
    _
  $region27: #{tpu_custom_call.1} parent=0 // pred_check_branch
    %214 = sbr.rel (0) target = $region29
  $region28: #{tpu_custom_call.1} parent=0 // pred_region
    _
  $region29: #{tpu_custom_call.1} parent=0 // pred_fallthru
    _
  // Predicated region
  $region30: #{tpu_custom_call.1} parent=0 // pred_check
    _
  $region31: #{tpu_custom_call.1} parent=0 // pred_check_branch
    %216 = sbr.rel (0) target = $region33
  $region32: #{tpu_custom_call.1} parent=0 // pred_region
    _
  $region33: #{tpu_custom_call.1} parent=0 // pred_fallthru
    _
  // Predicated region
  $region34: #{tpu_custom_call.1} parent=0 // pred_check
    _
  $region35: #{tpu_custom_call.1} parent=0 // pred_check_branch
    %218 = sbr.rel (0) target = $region37
  $region36: #{tpu_custom_call.1} parent=0 // pred_region
    _
  $region37: #{tpu_custom_call.1} parent=0 // pred_fallthru
    _
  // Predicated region
  $region38: #{tpu_custom_call.1} parent=0 // pred_check
    _
  $region39: #{tpu_custom_call.1} parent=0 // pred_check_branch
    %220 = sbr.rel (0) target = $region41
  $region40: #{tpu_custom_call.1} parent=0 // pred_region
    _
  $region41: #{tpu_custom_call.1} parent=0 // pred_fallthru
    _

</llo_original>
